<compile_context>
chip_gen: v7x
topology: tpu7x:2x2x1
jax: 0.10.0
libtpu: 0.0.40
codegen_flags: <defaults>
</compile_context>

<pallas_src>
import functools

import jax
import jax.numpy as jnp
from jax.experimental import pallas as pl
from jax.experimental.pallas import tpu as pltpu


def _rpad(n, m):
    return ((n + m - 1) // m) * m


def dlow_latent_kernel(x_ref, params_ref, out_ref, *,
                       d_model, w1_cols, w2_cols, wab_cols, nknz, offs):
    """One grid step: (blk_N, D) rows of agent_context -> (blk_N, out_w)."""
    o_w1, o_b1, o_w2, o_b2, o_wab, o_bab, o_eps = offs

    # Carve the packed parameter slab with static, lane-aligned slices
    # (every column extent below is a multiple of 128 -> unmasked vector loads).
    w1 = params_ref[o_w1:o_w1 + d_model, 0:w1_cols]
    b1 = params_ref[o_b1:o_b1 + 1, 0:w1_cols]
    w2 = params_ref[o_w2:o_w2 + w1_cols, 0:w2_cols]
    b2 = params_ref[o_b2:o_b2 + 1, 0:w2_cols]
    wab = params_ref[o_wab:o_wab + w2_cols, 0:wab_cols]
    bab = params_ref[o_bab:o_bab + 1, 0:wab_cols]
    # Pre-tiled shared eps row (1, nk*nz), folded into the slab by the wrapper.
    eps_row = params_ref[o_eps:o_eps + 1, 0:nknz].astype(jnp.float32)

    x = x_ref[...]

    # q_mlp: Linear + ReLU, twice.  Padded zero columns/rows ride for free on
    # the MXU (full 128/256 granules are pushed regardless); f32 accumulation.
    h = jnp.maximum(jnp.dot(x, w1, preferred_element_type=jnp.float32) + b1, 0.0)
    h = h.astype(x.dtype)
    h = jnp.maximum(jnp.dot(h, w2, preferred_element_type=jnp.float32) + b2, 0.0)
    h = h.astype(x.dtype)

    # Fused q_A|q_b head: one matmul; split with static lane slices.
    ab = jnp.dot(h, wab, preferred_element_type=jnp.float32) + bab
    A = ab[:, 0:nknz]
    b = ab[:, nknz:2 * nknz]

    z = A * eps_row + b
    logvar = jnp.log(A * A + 1e-8)      # EUP log -> effectively free vs. store path

    # Three direct sliced stores (no lane concatenate / XLU shuffles); mu is
    # stored straight from the head-matmul result.  Output block is 128-aligned.
    out_ref[:, 0:nknz] = z
    out_ref[:, nknz:2 * nknz] = b
    out_ref[:, 2 * nknz:3 * nknz] = logvar
    pad = out_ref.shape[1] - 3 * nknz
    if pad:  # keep the padded tail deterministic (sliced off in the wrapper)
        out_ref[:, 3 * nknz:3 * nknz + pad] = jnp.zeros(
            (x.shape[0], pad), out_ref.dtype)


def pack_params(params, eps_row, *, d_model, h1, h2, nknz, dtype=jnp.float32):
    """Pack (w1,b1,w2,b2,wA|wB,bA|bB,eps_row) into one (rows, width) slab.

    Column widths are padded to multiples of 128 (lane-dense loads); the
    contraction dims of layer 2 / the fused head are zero-row-padded to the
    previous layer's padded output width so the kernel can matmul full-width
    activations without re-slicing.
    """
    w1, b1, w2, b2, wA, bA, wB, bB = params
    wab = jnp.concatenate([wA, wB], axis=1)      # (h2, 2*nk*nz)
    bab = jnp.concatenate([bA, bB], axis=1)      # (1,  2*nk*nz)

    w1_cols = _rpad(h1, 128)
    w2_cols = _rpad(h2, 128)
    wab_cols = _rpad(2 * nknz, 128)
    width = max(w1_cols, w2_cols, wab_cols)

    segs = [
        (w1, _rpad(d_model, 8)),
        (b1, 8),
        (w2, w1_cols),       # contraction dim padded to layer-1 output width
        (b2, 8),
        (wab, w2_cols),      # contraction dim padded to layer-2 output width
        (bab, 8),
        (eps_row, 8),
    ]

    offs, blocks, rows = [], [], 0
    for s, r in segs:
        offs.append(rows)
        blk = jnp.zeros((r, width), dtype)
        blk = blk.at[:s.shape[0], :s.shape[1]].set(s.astype(dtype))
        blocks.append(blk)
        rows += r
    packed = jnp.concatenate(blocks, axis=0)     # (rows, width)
    return packed, tuple(offs), (w1_cols, w2_cols, wab_cols)


def dlow_forward(agent_context, params, eps, *, nk, nz,
                 max_blk_n=2048, use_bf16=False):
    """agent_context: (1, N, D_model) f32. Returns dict mimicking self.data fields."""
    x = agent_context[0]                         # (N, D)
    N, d_model = x.shape
    h1 = params[0].shape[1]
    h2 = params[2].shape[1]
    nknz = nk * nz

    # share_eps=True: pre-tile (1, nz) -> (1, nk*nz) once in the wrapper (no
    # per-grid-step XLU tile) and fold it into the parameter slab (2 input DMAs).
    eps_row = jnp.tile(eps.astype(jnp.float32), (1, nk))

    mxu_dtype = jnp.bfloat16 if use_bf16 else jnp.float32
    packed, offs, (w1_cols, w2_cols, wab_cols) = pack_params(
        params, eps_row, d_model=d_model, h1=h1, h2=h2, nknz=nknz,
        dtype=mxu_dtype)
    p_rows, p_cols = packed.shape

    # Agent-row tiling: large tiles amortize the ~0.35us per-grid-step cost;
    # choose the block count so (a) blocks are <= max_blk_n rows, (b) there are
    # >=2 grid steps when N allows (both v7x TensorCores get work), and (c) the
    # padded tail is at most one block.
    nb = pl.cdiv(N, max_blk_n)
    if N > 8:
        nb = max(nb, 2)
    blk_n = _rpad(pl.cdiv(N, nb), 8)
    n_pad = pl.cdiv(N, blk_n) * blk_n
    if n_pad != N:
        x = jnp.pad(x, ((0, n_pad - N), (0, 0)))
    x = x.astype(mxu_dtype)
    grid = (n_pad // blk_n,)

    out_w = _rpad(3 * nknz, 128)                 # lane-dense writeback slab

    kernel = functools.partial(
        dlow_latent_kernel,
        d_model=d_model, w1_cols=w1_cols, w2_cols=w2_cols, wab_cols=wab_cols,
        nknz=nknz, offs=offs)

    itemsize = jnp.dtype(mxu_dtype).itemsize
    flops = (2 * n_pad * (d_model * w1_cols + w1_cols * w2_cols
                          + w2_cols * wab_cols) + 5 * n_pad * nknz)
    bytes_accessed = (itemsize * (n_pad * d_model + p_rows * p_cols)
                      + 4 * n_pad * out_w)

    out_flat = pl.pallas_call(
        kernel,
        out_shape=jax.ShapeDtypeStruct((n_pad, out_w), jnp.float32),
        grid_spec=pltpu.PrefetchScalarGridSpec(
            num_scalar_prefetch=0,
            grid=grid,
            in_specs=[
                pl.BlockSpec((blk_n, d_model), lambda i: (i, 0)),   # agent rows
                pl.BlockSpec((p_rows, p_cols), lambda i: (0, 0)),   # VMEM-resident params+eps
            ],
            out_specs=pl.BlockSpec((blk_n, out_w), lambda i: (i, 0)),
        ),
        compiler_params=pltpu.CompilerParams(
            dimension_semantics=("parallel",)),
        cost_estimate=pl.CostEstimate(
            flops=flops,
            transcendentals=n_pad * nknz,
            bytes_accessed=bytes_accessed),
    )(x, packed)

    out_flat = out_flat[:N]
    z_flat = out_flat[:, 0:nknz]
    mu_flat = out_flat[:, nknz:2 * nknz]
    lv_flat = out_flat[:, 2 * nknz:3 * nknz]

    # view(1,N,nk,nz).permute(0,2,1,3).reshape(nk,N,nz) -- layout glue only.
    def to_knz(t):
        return t.reshape(N, nk, nz).transpose(1, 0, 2)

    return {
        "q_z_dist_dlow": {"mu": to_knz(mu_flat), "logvar": to_knz(lv_flat)},
        "z": to_knz(z_flat),
    }


def init_params(key, d_model, h1, h2, nk, nz):
    ks = jax.random.split(key, 8)

    def lin(kw, kb, fan_in, fan_out):
        bound = 1.0 / jnp.sqrt(fan_in)
        w = jax.random.uniform(kw, (fan_in, fan_out), jnp.float32, -bound, bound)
        b = jax.random.uniform(kb, (1, fan_out), jnp.float32, -bound, bound)
        return w, b

    w1, b1 = lin(ks[0], ks[1], d_model, h1)
    w2, b2 = lin(ks[2], ks[3], h1, h2)
    wA, bA = lin(ks[4], ks[5], h2, nk * nz)
    wB, bB = lin(ks[6], ks[7], h2, nk * nz)
    return (w1, b1, w2, b2, wA, bA, wB, bB)


def _reference(agent_context, params, eps, nk, nz):
    x = agent_context[0]
    w1, b1, w2, b2, wA, bA, wB, bB = params
    h = jnp.maximum(x @ w1 + b1, 0.0)
    h = jnp.maximum(h @ w2 + b2, 0.0)
    N = x.shape[0]
    A = (h @ wA + bA).reshape(N, nk, nz).transpose(1, 0, 2)
    b = (h @ wB + bB).reshape(N, nk, nz).transpose(1, 0, 2)
    z = A * eps[0] + b
    logvar = jnp.log(A ** 2 + 1e-8)
    return z, b, logvar


if __name__ == "__main__":
    # small, module-consistent shapes
    D_MODEL = 32          # pred_model_dim (tf_model_dim)
    QNET_MLP = [64, 32]   # qnet_mlp hidden dims
    NK, NZ = 4, 8         # sample_k, nz
    N_AGENTS = 8

    key = jax.random.PRNGKey(0)
    k_ctx, k_par, k_eps = jax.random.split(key, 3)

    agent_context = jax.random.normal(k_ctx, (1, N_AGENTS, D_MODEL), jnp.float32)
    params = init_params(k_par, D_MODEL, QNET_MLP[0], QNET_MLP[1], NK, NZ)
    eps = jax.random.normal(k_eps, (1, NZ), jnp.float32)   # share_eps=True

    out = dlow_forward(agent_context, params, eps, nk=NK, nz=NZ)
    jax.block_until_ready(out)

    z_ref, mu_ref, lv_ref = _reference(agent_context, params, eps, NK, NZ)
    assert out["z"].shape == (NK, N_AGENTS, NZ)
    assert jnp.allclose(out["z"], z_ref, atol=1e-5)
    assert jnp.allclose(out["q_z_dist_dlow"]["mu"], mu_ref, atol=1e-5)
    assert jnp.allclose(out["q_z_dist_dlow"]["logvar"], lv_ref, atol=1e-4)

    print("KERNEL_OK")
</pallas_src>

<mosaic_0001>
module attributes {stable_mosaic.version = 11 : i64} {
  func.func @dlow_latent_kernel(%arg0: i32, %arg1: memref<8x32xf32, #tpu.memory_space<vmem>>, %arg2: memref<320x128xf32, #tpu.memory_space<vmem>>, %arg3: memref<8x128xf32, #tpu.memory_space<vmem>>) attributes {dimension_semantics = [#tpu.dimension_semantics<parallel>], iteration_bounds = array<i64: 1>, scalar_prefetch = 0 : i64, scratch_operands = 0 : i64, tpu.core_type = #tpu.core_type<tc>, window_params = [{transform_indices = @transform_0, window_bounds = array<i64: 8, 32>}, {pipeline_mode = #tpu.pipeline_mode<synchronous>, transform_indices = @transform_1, window_bounds = array<i64: 320, 128>}, {transform_indices = @transform_2, window_bounds = array<i64: 8, 128>}]} {
    %c0 = arith.constant 0 : index
    %c0_0 = arith.constant 0 : index
    %0 = vector.load %arg2[%c0, %c0_0] : memref<320x128xf32, #tpu.memory_space<vmem>>, vector<32x128xf32>
    %c32 = arith.constant 32 : index
    %c0_1 = arith.constant 0 : index
    %1 = vector.load %arg2[%c32, %c0_1] : memref<320x128xf32, #tpu.memory_space<vmem>>, vector<1x128xf32>
    %c40 = arith.constant 40 : index
    %c0_2 = arith.constant 0 : index
    %2 = vector.load %arg2[%c40, %c0_2] : memref<320x128xf32, #tpu.memory_space<vmem>>, vector<128x128xf32>
    %c168 = arith.constant 168 : index
    %c0_3 = arith.constant 0 : index
    %3 = vector.load %arg2[%c168, %c0_3] : memref<320x128xf32, #tpu.memory_space<vmem>>, vector<1x128xf32>
    %c176 = arith.constant 176 : index
    %c0_4 = arith.constant 0 : index
    %4 = vector.load %arg2[%c176, %c0_4] : memref<320x128xf32, #tpu.memory_space<vmem>>, vector<128x128xf32>
    %c304 = arith.constant 304 : index
    %c0_5 = arith.constant 0 : index
    %5 = vector.load %arg2[%c304, %c0_5] : memref<320x128xf32, #tpu.memory_space<vmem>>, vector<1x128xf32>
    %c312 = arith.constant 312 : index
    %c0_6 = arith.constant 0 : index
    %6 = vector.load %arg2[%c312, %c0_6] : memref<320x128xf32, #tpu.memory_space<vmem>>, vector<1x32xf32>
    %c0_7 = arith.constant 0 : index
    %c0_8 = arith.constant 0 : index
    %7 = vector.load %arg1[%c0_7, %c0_8] : memref<8x32xf32, #tpu.memory_space<vmem>>, vector<8x32xf32>
    %cst = arith.constant dense<0.000000e+00> : vector<8x128xf32>
    %8 = tpu.matmul %7, %0, %cst {dimension_numbers = #tpu.dot_dimension_numbers<[1], [0], [0], [1], [0, 0, 1, 1], [], []>} : vector<8x32xf32>, vector<32x128xf32>, vector<8x128xf32> -> vector<8x128xf32>
    %9 = vector.broadcast %1 : vector<1x128xf32> to vector<8x128xf32>
    %10 = arith.addf %8, %9 : vector<8x128xf32>
    %cst_9 = arith.constant 0.000000e+00 : f32
    %11 = vector.broadcast %cst_9 : f32 to vector<8x128xf32>
    %12 = arith.maximumf %10, %11 : vector<8x128xf32>
    %cst_10 = arith.constant dense<0.000000e+00> : vector<8x128xf32>
    %13 = tpu.matmul %12, %2, %cst_10 {dimension_numbers = #tpu.dot_dimension_numbers<[1], [0], [0], [1], [0, 0, 1, 1], [], []>} : vector<8x128xf32>, vector<128x128xf32>, vector<8x128xf32> -> vector<8x128xf32>
    %14 = vector.broadcast %3 : vector<1x128xf32> to vector<8x128xf32>
    %15 = arith.addf %13, %14 : vector<8x128xf32>
    %cst_11 = arith.constant 0.000000e+00 : f32
    %16 = vector.broadcast %cst_11 : f32 to vector<8x128xf32>
    %17 = arith.maximumf %15, %16 : vector<8x128xf32>
    %cst_12 = arith.constant dense<0.000000e+00> : vector<8x128xf32>
    %18 = tpu.matmul %17, %4, %cst_12 {dimension_numbers = #tpu.dot_dimension_numbers<[1], [0], [0], [1], [0, 0, 1, 1], [], []>} : vector<8x128xf32>, vector<128x128xf32>, vector<8x128xf32> -> vector<8x128xf32>
    %19 = vector.broadcast %5 : vector<1x128xf32> to vector<8x128xf32>
    %20 = arith.addf %18, %19 : vector<8x128xf32>
    %21 = vector.extract_strided_slice %20 {offsets = [0, 0], sizes = [8, 32], strides = [1, 1]} : vector<8x128xf32> to vector<8x32xf32>
    %22 = vector.extract_strided_slice %20 {offsets = [0, 32], sizes = [8, 32], strides = [1, 1]} : vector<8x128xf32> to vector<8x32xf32>
    %23 = vector.broadcast %6 : vector<1x32xf32> to vector<8x32xf32>
    %24 = arith.mulf %21, %23 : vector<8x32xf32>
    %25 = arith.addf %24, %22 : vector<8x32xf32>
    %26 = arith.mulf %21, %21 : vector<8x32xf32>
    %cst_13 = arith.constant 9.99999993E-9 : f32
    %27 = vector.broadcast %cst_13 : f32 to vector<8x32xf32>
    %28 = arith.addf %26, %27 : vector<8x32xf32>
    %29 = math.log %28 : vector<8x32xf32>
    %c0_14 = arith.constant 0 : index
    %c0_15 = arith.constant 0 : index
    %30 = vector.load %arg3[%c0_14, %c0_15] : memref<8x128xf32, #tpu.memory_space<vmem>>, vector<8x32xf32>
    tpu.vector_store %arg3[%c0_14, %c0_15], %25 {strides = array<i32>} : memref<8x128xf32, #tpu.memory_space<vmem>>, vector<8x32xf32>,
    %c0_16 = arith.constant 0 : index
    %c32_17 = arith.constant 32 : index
    %31 = vector.load %arg3[%c0_16, %c32_17] : memref<8x128xf32, #tpu.memory_space<vmem>>, vector<8x32xf32>
    tpu.vector_store %arg3[%c0_16, %c32_17], %22 {strides = array<i32>} : memref<8x128xf32, #tpu.memory_space<vmem>>, vector<8x32xf32>,
    %c0_18 = arith.constant 0 : index
    %c64 = arith.constant 64 : index
    %32 = vector.load %arg3[%c0_18, %c64] : memref<8x128xf32, #tpu.memory_space<vmem>>, vector<8x32xf32>
    tpu.vector_store %arg3[%c0_18, %c64], %29 {strides = array<i32>} : memref<8x128xf32, #tpu.memory_space<vmem>>, vector<8x32xf32>,
    %cst_19 = arith.constant 0.000000e+00 : f32
    %33 = vector.broadcast %cst_19 : f32 to vector<8x32xf32>
    %c0_20 = arith.constant 0 : index
    %c96 = arith.constant 96 : index
    %34 = vector.load %arg3[%c0_20, %c96] : memref<8x128xf32, #tpu.memory_space<vmem>>, vector<8x32xf32>
    tpu.vector_store %arg3[%c0_20, %c96], %33 {strides = array<i32>} : memref<8x128xf32, #tpu.memory_space<vmem>>, vector<8x32xf32>,
    return
  }
  func.func @transform_0(%arg0: i32) -> (i32, i32) {
    %c0_i32 = arith.constant 0 : i32
    %c0_i32_0 = arith.constant 0 : i32
    return %arg0, %c0_i32 : i32, i32
  }
  func.func @transform_1(%arg0: i32) -> (i32, i32) {
    %c0_i32 = arith.constant 0 : i32
    %c0_i32_0 = arith.constant 0 : i32
    %c0_i32_1 = arith.constant 0 : i32
    return %c0_i32, %c0_i32_0 : i32, i32
  }
  func.func @transform_2(%arg0: i32) -> (i32, i32) {
    %c0_i32 = arith.constant 0 : i32
    %c0_i32_0 = arith.constant 0 : i32
    return %arg0, %c0_i32 : i32, i32
  }
}

</mosaic_0001>

<llo_original>
// kernel: tpu_custom_call.1
$region0: #{tpu_custom_call.1}
  #allocation0 [shape = 'u32[]', space=smem, size = 0x4, offset = 0x4, fixed_abs, tag = 'smem constant byte address 0x4 - core index']
  #allocation1 [shape = 'u32[144,128]{1,0:T(1,128)}', space=vmem, size = 0x12000, scoped, tag = 'internal scratch']
  %s0 = inlined_call_operand.hbm [shape: f32[8,32], index: 0, kind: input, shape index: {}]
  %s1 = inlined_call_operand.hbm [shape: f32[320,128], index: 1, kind: input, shape index: {}]
  %s2 = inlined_call_operand.hbm [shape: f32[8,128], index: 2, kind: output, shape index: {}]
  %s3 = sld [smem:[#allocation0]]
  $region26: #{tpu_custom_call.1} parent=0
    _
  %s5 = ssub.s32 1, %s3
  %s6 = scalar_select 0, %s5, %s3
  $region1: #{tpu_custom_call.1} parent=0
    #allocation2 [shape = 'u8[4096]{0}', space=vmem, size = 0x1000, scoped, tag = 'input window, operand 0, single buffered']
    #allocation3 [shape = 's32[1]{0}', space=sflag, size = 0x4, scoped, tag = 'scoped memory for tpu_custom_call.1']
    #allocation4 [shape = 's32[1]{0}', space=sflag, size = 0x4, scoped, tag = 'scoped memory for tpu_custom_call.1']
    #allocation5 [shape = 'u8[163840]{0}', space=vmem, size = 0x28000, scoped, tag = 'input window, operand 1, single buffered']
    #allocation6 [shape = 's32[1]{0}', space=sflag, size = 0x4, scoped, tag = 'scoped memory for tpu_custom_call.1']
    #allocation7 [shape = 'u8[4096]{0}', space=vmem, size = 0x1000, scoped, tag = 'output window, operand 0, single buffered']
    %7 = vsyncpa [#allocation3], 0
    %8 = vsyncpa [#allocation6], 0
    %9 = vsyncpa [#allocation4], 0
    // Predicated region
    $region2: #{tpu_custom_call.1} parent=1 // pred_check
      _
    $region3: #{tpu_custom_call.1} parent=1 // pred_check_branch
      %11 = sbr.rel (0) target = $region5
    $region4: #{tpu_custom_call.1} parent=1 // pred_region
      %s13 = ssub.s32 128, 128
      %14 = vsyncadd [#allocation3], %s13
      %s16 = sshll.u32 [#allocation2], 4
      %s17 = int_to_ptr.vmem [resolvable:$true] %s16
      %19 = dma.hbm_to_vmem [thread:$0]  %s0, 128, %s17, [#allocation3]
    $region5: #{tpu_custom_call.1} parent=1 // pred_fallthru
      _
    // Predicated region
    $region6: #{tpu_custom_call.1} parent=1 // pred_check
      _
    $region7: #{tpu_custom_call.1} parent=1 // pred_check_branch
      %21 = sbr.rel (0) target = $region9
    $region8: #{tpu_custom_call.1} parent=1 // pred_region
      %s23 = ssub.s32 5120, 5120
      %24 = vsyncadd [#allocation6], %s23
      %s25 = sshll.u32 [#allocation5], 4
      %s26 = int_to_ptr.vmem [resolvable:$true] %s25
      %31 = dma.hbm_to_vmem [thread:$0]  %s1, 5120, %s26, [#allocation6], 128, 128, 8
    $region9: #{tpu_custom_call.1} parent=1 // pred_fallthru
      _
    // Predicated region
    $region10: #{tpu_custom_call.1} parent=1 // pred_check
      _
    $region11: #{tpu_custom_call.1} parent=1 // pred_check_branch
      %33 = sbr.rel (0) target = $region13
    $region12: #{tpu_custom_call.1} parent=1 // pred_region
      %34 = dma.done [#allocation3], 128
    $region13: #{tpu_custom_call.1} parent=1 // pred_fallthru
      _
    // Predicated region
    $region14: #{tpu_custom_call.1} parent=1 // pred_check
      _
    $region15: #{tpu_custom_call.1} parent=1 // pred_check_branch
      %36 = sbr.rel (0) target = $region17
    $region16: #{tpu_custom_call.1} parent=1 // pred_region
      %37 = dma.done [#allocation6], 5120
    $region17: #{tpu_custom_call.1} parent=1 // pred_fallthru
      _
    %v38 = vld [vmem:[#allocation5] sm:$0xff]
    %v39 = vld [vmem:[#allocation5 + $0x8] sm:$0xff]
    %v40 = vld [vmem:[#allocation5 + $0x10] sm:$0xff]
    %v41 = vld [vmem:[#allocation5 + $0x18] sm:$0xff]
    %v42 = vld [vmem:[#allocation5 + $0x20] sm:$0x1]
    %v43 = vld [vmem:[#allocation5 + $0x28] sm:$0xff]
    %v44 = vld [vmem:[#allocation5 + $0x30] sm:$0xff]
    %v45 = vld [vmem:[#allocation5 + $0x38] sm:$0xff]
    %v46 = vld [vmem:[#allocation5 + $0x40] sm:$0xff]
    %v47 = vld [vmem:[#allocation5 + $0x48] sm:$0xff]
    %v48 = vld [vmem:[#allocation5 + $0x50] sm:$0xff]
    %v49 = vld [vmem:[#allocation5 + $0x58] sm:$0xff]
    %v50 = vld [vmem:[#allocation5 + $0x60] sm:$0xff]
    %v51 = vld [vmem:[#allocation5 + $0x68] sm:$0xff]
    %v52 = vld [vmem:[#allocation5 + $0x70] sm:$0xff]
    %v53 = vld [vmem:[#allocation5 + $0x78] sm:$0xff]
    %v54 = vld [vmem:[#allocation5 + $0x80] sm:$0xff]
    %v55 = vld [vmem:[#allocation5 + $0x88] sm:$0xff]
    %v56 = vld [vmem:[#allocation5 + $0x90] sm:$0xff]
    %v57 = vld [vmem:[#allocation5 + $0x98] sm:$0xff]
    %v58 = vld [vmem:[#allocation5 + $0xa0] sm:$0xff]
    %v59 = vld [vmem:[#allocation5 + $0xa8] sm:$0x1]
    %v60 = vld [vmem:[#allocation5 + $0xb0] sm:$0xff]
    %v61 = vld [vmem:[#allocation5 + $0xb8] sm:$0xff]
    %v62 = vld [vmem:[#allocation5 + $0xc0] sm:$0xff]
    %v63 = vld [vmem:[#allocation5 + $0xc8] sm:$0xff]
    %v64 = vld [vmem:[#allocation5 + $0xd0] sm:$0xff]
    %v65 = vld [vmem:[#allocation5 + $0xd8] sm:$0xff]
    %v66 = vld [vmem:[#allocation5 + $0xe0] sm:$0xff]
    %v67 = vld [vmem:[#allocation5 + $0xe8] sm:$0xff]
    %v68 = vld [vmem:[#allocation5 + $0xf0] sm:$0xff]
    %v69 = vld [vmem:[#allocation5 + $0xf8] sm:$0xff]
    %v70 = vld [vmem:[#allocation5 + $0x100] sm:$0xff]
    %v71 = vld [vmem:[#allocation5 + $0x108] sm:$0xff]
    %v72 = vld [vmem:[#allocation5 + $0x110] sm:$0xff]
    %v73 = vld [vmem:[#allocation5 + $0x118] sm:$0xff]
    %v74 = vld [vmem:[#allocation5 + $0x120] sm:$0xff]
    %v75 = vld [vmem:[#allocation5 + $0x128] sm:$0xff]
    %v76 = vld [vmem:[#allocation5 + $0x130] sm:$0x1]
    %v77 = vld [vmem:[#allocation5 + $0x138] sm:$0x1]
    %v78 = vld [vmem:[#allocation2] sm:$0xff]
    %v79 = vlaneseq
    %v80 = vshrl.u32 %v79, 7
    %v81 = vsub.s32 0, %v80
    %v82 = vrot.slane %v42, %v81
    %vm83 = vcmask 261120
    %v85 = vsel %vm83, %v78, 0
    %87 = vmatprep.subr.mxu0 0.0
    %88 = vmatpush1.msra.mxu0 %v38
    %89 = vmatprep.subr.mxu0 0.0
    %90 = vmatpush1.msra.mxu0 %v39
    %91 = vmatprep.subr.mxu0 0.0
    %92 = vmatpush1.msra.mxu0 %v40
    %93 = vmatprep.subr.mxu0 0.0
    %94 = vmatpush1.msra.mxu0 %v41
    %95 = vmatprep.subr.mxu0 0.0
    %96 = vmatpush1.msra.mxu0 0.0
    %97 = vmatprep.subr.mxu0 0.0
    %98 = vmatpush1.msra.mxu0 0.0
    %99 = vmatprep.subr.mxu0 0.0
    %100 = vmatpush1.msra.mxu0 0.0
    %101 = vmatprep.subr.mxu0 0.0
    %102 = vmatpush1.msra.mxu0 0.0
    %103 = vmatprep.subr.mxu0 0.0
    %104 = vmatpush1.msra.mxu0 0.0
    %105 = vmatprep.subr.mxu0 0.0
    %106 = vmatpush1.msra.mxu0 0.0
    %107 = vmatprep.subr.mxu0 0.0
    %108 = vmatpush1.msra.mxu0 0.0
    %109 = vmatprep.subr.mxu0 0.0
    %110 = vmatpush1.msra.mxu0 0.0
    %111 = vmatprep.subr.mxu0 0.0
    %112 = vmatpush1.msra.mxu0 0.0
    %113 = vmatprep.subr.mxu0 0.0
    %114 = vmatpush1.msra.mxu0 0.0
    %115 = vmatprep.subr.mxu0 0.0
    %116 = vmatpush1.msra.mxu0 0.0
    %117 = vmatprep.subr.mxu0 0.0
    %118 = vmatpush1.msra.mxu0 0.0
    %119 = vmatprep.subr.mxu0 0.0
    %120 = vmatpush1.msra.mxu0 0.0
    %121 = vmatprep.subr.mxu0 0.0
    %122 = vmatpush1.msra.mxu0 0.0
    %123 = vmatprep.subr.mxu0 0.0
    %124 = vmatpush1.msra.mxu0 0.0
    %125 = vmatprep.subr.mxu0 0.0
    %126 = vmatpush1.msra.mxu0 0.0
    %127 = vmatprep.subr.mxu0 0.0
    %128 = vmatpush1.msra.mxu0 0.0
    %129 = vmatprep.subr.mxu0 0.0
    %130 = vmatpush1.msra.mxu0 0.0
    %131 = vmatprep.subr.mxu0 0.0
    %132 = vmatpush1.msra.mxu0 0.0
    %133 = vmatprep.subr.mxu0 0.0
    %134 = vmatpush1.msra.mxu0 0.0
    %135 = vmatprep.subr.mxu0 0.0
    %136 = vmatpush1.msra.mxu0 0.0
    %137 = vmatprep.subr.mxu0 0.0
    %138 = vmatpush1.msra.mxu0 0.0
    %139 = vmatprep.subr.mxu0 0.0
    %140 = vmatpush1.msra.mxu0 0.0
    %141 = vmatprep.subr.mxu0 0.0
    %142 = vmatpush1.msra.mxu0 0.0
    %143 = vmatprep.subr.mxu0 0.0
    %144 = vmatpush1.msra.mxu0 0.0
    %145 = vmatprep.subr.mxu0 0.0
    %146 = vmatpush1.msra.mxu0 0.0
    %147 = vmatprep.subr.mxu0 0.0
    %148 = vmatpush1.msra.mxu0 0.0
    %149 = vmatprep.subr.mxu0 0.0
    %150 = vmatpush1.msra.mxu0 0.0
    %151 = vmatprep.mubr.f32.mxu0 0.0
    %152 = vmatmul.mubr.f32.gmra.mrb[0].mxu0 %v85
    %v153 = vpop.f32.mrb[0].mxu0
    %v154 = vadd.f32 %v82, %v153
    %v155 = vpop.f32.mrb[0].mxu0
    %156 = vdwg.mxu0
    %v157 = vmax.f32 %v154, 0.0
    %v158 = vlaneseq
    %v159 = vshrl.u32 %v158, 7
    %v160 = vsub.s32 0, %v159
    %v161 = vrot.slane %v59, %v160
    %162 = vmatprep.subr.mxu0 0.0
    %163 = vmatpush1.msra.mxu0 %v43
    %164 = vmatprep.subr.mxu0 0.0
    %165 = vmatpush1.msra.mxu0 %v44
    %166 = vmatprep.subr.mxu0 0.0
    %167 = vmatpush1.msra.mxu0 %v45
    %168 = vmatprep.subr.mxu0 0.0
    %169 = vmatpush1.msra.mxu0 %v46
    %170 = vmatprep.subr.mxu0 0.0
    %171 = vmatpush1.msra.mxu0 %v47
    %172 = vmatprep.subr.mxu0 0.0
    %173 = vmatpush1.msra.mxu0 %v48
    %174 = vmatprep.subr.mxu0 0.0
    %175 = vmatpush1.msra.mxu0 %v49
    %176 = vmatprep.subr.mxu0 0.0
    %177 = vmatpush1.msra.mxu0 %v50
    %178 = vmatprep.subr.mxu0 0.0
    %179 = vmatpush1.msra.mxu0 %v51
    %180 = vmatprep.subr.mxu0 0.0
    %181 = vmatpush1.msra.mxu0 %v52
    %182 = vmatprep.subr.mxu0 0.0
    %183 = vmatpush1.msra.mxu0 %v53
    %184 = vmatprep.subr.mxu0 0.0
    %185 = vmatpush1.msra.mxu0 %v54
    %186 = vmatprep.subr.mxu0 0.0
    %187 = vmatpush1.msra.mxu0 %v55
    %188 = vmatprep.subr.mxu0 0.0
    %189 = vmatpush1.msra.mxu0 %v56
    %190 = vmatprep.subr.mxu0 0.0
    %191 = vmatpush1.msra.mxu0 %v57
    %192 = vmatprep.subr.mxu0 0.0
    %193 = vmatpush1.msra.mxu0 %v58
    %194 = vmatprep.subr.mxu0 0.0
    %195 = vmatpush1.msra.mxu0 0.0
    %196 = vmatprep.subr.mxu0 0.0
    %197 = vmatpush1.msra.mxu0 0.0
    %198 = vmatprep.subr.mxu0 0.0
    %199 = vmatpush1.msra.mxu0 0.0
    %200 = vmatprep.subr.mxu0 0.0
    %201 = vmatpush1.msra.mxu0 0.0
    %202 = vmatprep.subr.mxu0 0.0
    %203 = vmatpush1.msra.mxu0 0.0
    %204 = vmatprep.subr.mxu0 0.0
    %205 = vmatpush1.msra.mxu0 0.0
    %206 = vmatprep.subr.mxu0 0.0
    %207 = vmatpush1.msra.mxu0 0.0
    %208 = vmatprep.subr.mxu0 0.0
    %209 = vmatpush1.msra.mxu0 0.0
    %210 = vmatprep.subr.mxu0 0.0
    %211 = vmatpush1.msra.mxu0 0.0
    %212 = vmatprep.subr.mxu0 0.0
    %213 = vmatpush1.msra.mxu0 0.0
    %214 = vmatprep.subr.mxu0 0.0
    %215 = vmatpush1.msra.mxu0 0.0
    %216 = vmatprep.subr.mxu0 0.0
    %217 = vmatpush1.msra.mxu0 0.0
    %218 = vmatprep.subr.mxu0 0.0
    %219 = vmatpush1.msra.mxu0 0.0
    %220 = vmatprep.subr.mxu0 0.0
    %221 = vmatpush1.msra.mxu0 0.0
    %222 = vmatprep.subr.mxu0 0.0
    %223 = vmatpush1.msra.mxu0 0.0
    %224 = vmatprep.subr.mxu0 0.0
    %225 = vmatpush1.msra.mxu0 0.0
    %226 = vmatprep.mubr.f32.mxu0 0.0
    %227 = vmatmul.mubr.f32.gmra.mrb[0].mxu0 %v157
    %v228 = vpop.f32.mrb[0].mxu0
    %v229 = vadd.f32 %v161, %v228
    %v230 = vpop.f32.mrb[0].mxu0
    %231 = vdwg.mxu0
    %v232 = vmax.f32 %v229, 0.0
    %v233 = vlaneseq
    %v234 = vshrl.u32 %v233, 7
    %v235 = vsub.s32 0, %v234
    %v236 = vrot.slane %v76, %v235
    %237 = vmatprep.subr.mxu0 0.0
    %238 = vmatpush1.msra.mxu0 %v60
    %239 = vmatprep.subr.mxu0 0.0
    %240 = vmatpush1.msra.mxu0 %v61
    %241 = vmatprep.subr.mxu0 0.0
    %242 = vmatpush1.msra.mxu0 %v62
    %243 = vmatprep.subr.mxu0 0.0
    %244 = vmatpush1.msra.mxu0 %v63
    %245 = vmatprep.subr.mxu0 0.0
    %246 = vmatpush1.msra.mxu0 %v64
    %247 = vmatprep.subr.mxu0 0.0
    %248 = vmatpush1.msra.mxu0 %v65
    %249 = vmatprep.subr.mxu0 0.0
    %250 = vmatpush1.msra.mxu0 %v66
    %251 = vmatprep.subr.mxu0 0.0
    %252 = vmatpush1.msra.mxu0 %v67
    %253 = vmatprep.subr.mxu0 0.0
    %254 = vmatpush1.msra.mxu0 %v68
    %255 = vmatprep.subr.mxu0 0.0
    %256 = vmatpush1.msra.mxu0 %v69
    %257 = vmatprep.subr.mxu0 0.0
    %258 = vmatpush1.msra.mxu0 %v70
    %259 = vmatprep.subr.mxu0 0.0
    %260 = vmatpush1.msra.mxu0 %v71
    %261 = vmatprep.subr.mxu0 0.0
    %262 = vmatpush1.msra.mxu0 %v72
    %263 = vmatprep.subr.mxu0 0.0
    %264 = vmatpush1.msra.mxu0 %v73
    %265 = vmatprep.subr.mxu0 0.0
    %266 = vmatpush1.msra.mxu0 %v74
    %267 = vmatprep.subr.mxu0 0.0
    %268 = vmatpush1.msra.mxu0 %v75
    %269 = vmatprep.subr.mxu0 0.0
    %270 = vmatpush1.msra.mxu0 0.0
    %271 = vmatprep.subr.mxu0 0.0
    %272 = vmatpush1.msra.mxu0 0.0
    %273 = vmatprep.subr.mxu0 0.0
    %274 = vmatpush1.msra.mxu0 0.0
    %275 = vmatprep.subr.mxu0 0.0
    %276 = vmatpush1.msra.mxu0 0.0
    %277 = vmatprep.subr.mxu0 0.0
    %278 = vmatpush1.msra.mxu0 0.0
    %279 = vmatprep.subr.mxu0 0.0
    %280 = vmatpush1.msra.mxu0 0.0
    %281 = vmatprep.subr.mxu0 0.0
    %282 = vmatpush1.msra.mxu0 0.0
    %283 = vmatprep.subr.mxu0 0.0
    %284 = vmatpush1.msra.mxu0 0.0
    %285 = vmatprep.subr.mxu0 0.0
    %286 = vmatpush1.msra.mxu0 0.0
    %287 = vmatprep.subr.mxu0 0.0
    %288 = vmatpush1.msra.mxu0 0.0
    %289 = vmatprep.subr.mxu0 0.0
    %290 = vmatpush1.msra.mxu0 0.0
    %291 = vmatprep.subr.mxu0 0.0
    %292 = vmatpush1.msra.mxu0 0.0
    %293 = vmatprep.subr.mxu0 0.0
    %294 = vmatpush1.msra.mxu0 0.0
    %295 = vmatprep.subr.mxu0 0.0
    %296 = vmatpush1.msra.mxu0 0.0
    %297 = vmatprep.subr.mxu0 0.0
    %298 = vmatpush1.msra.mxu0 0.0
    %299 = vmatprep.subr.mxu0 0.0
    %300 = vmatpush1.msra.mxu0 0.0
    %301 = vmatprep.mubr.f32.mxu0 0.0
    %302 = vmatmul.mubr.f32.gmra.mrb[0].mxu0 %v232
    %v303 = vpop.f32.mrb[0].mxu0
    %v304 = vadd.f32 %v236, %v303
    %v305 = vpop.f32.mrb[0].mxu0
    %306 = vdwg.mxu0
    %v307 = vlaneseq
    %v308 = vshrl.u32 %v307, 7
    %v309 = vsub.s32 0, %v308
    %v310 = vrot.slane %v77, %v309
    %v311 = vmul.f32 %v304, %v310
    %313 = vrot.lane.b32.xlu0 %v304, 96
    %v314 = vpop.permute.xlu0 %313
    %v316 = vadd.f32 %v311, %v314
    %v317 = vmul.f32 %v304, %v304
    %v318 = vadd.f32 %v317, 1e-08
    %v319 = vlog2.pop %v318
    %v320 = vmul.f32 %v319, 0.6931472
    %321 = vst.msk [vmem:[#allocation7] sm:$0xff] %vm83, %v316
    %vm322 = vcmask 523520
    %323 = vst.msk [vmem:[#allocation7] sm:$0xff] %vm322, %v304
    %325 = vrot.lane.b32.xlu0 %v320, 64
    %v326 = vpop.permute.xlu0 %325
    %vm328 = vcmask 785920
    %329 = vst.msk [vmem:[#allocation7] sm:$0xff] %vm328, %v326
    %vm330 = vcmask 1048320
    %331 = vst.msk [vmem:[#allocation7] sm:$0xff] %vm330, 0.0
    // Predicated region
    $region18: #{tpu_custom_call.1} parent=1 // pred_check
      _
    $region19: #{tpu_custom_call.1} parent=1 // pred_check_branch
      %333 = sbr.rel (0) target = $region21
    $region20: #{tpu_custom_call.1} parent=1 // pred_region
      %s335 = ssub.s32 128, 128
      %336 = vsyncadd [#allocation4], %s335
      %s338 = sshll.u32 [#allocation7], 4
      %s339 = int_to_ptr.vmem [resolvable:$true] %s338
      %341 = dma.vmem_to_hbm [thread:$0]  %s339, 128, %s2, [#allocation4]
    $region21: #{tpu_custom_call.1} parent=1 // pred_fallthru
      _
    // Predicated region
    $region22: #{tpu_custom_call.1} parent=1 // pred_check
      _
    $region23: #{tpu_custom_call.1} parent=1 // pred_check_branch
      %343 = sbr.rel (0) target = $region25
    $region24: #{tpu_custom_call.1} parent=1 // pred_region
      %344 = dma.done [#allocation4], 128
    $region25: #{tpu_custom_call.1} parent=1 // pred_fallthru
      _
    %345 = vsyncpa [#allocation3], 1
    %346 = vsyncpa [#allocation6], 1
    %347 = vsyncpa [#allocation4], 1

</llo_original>
